<compile_context>
chip_gen: v7x
topology: tpu7x:2x2x1
jax: 0.10.0
libtpu: 0.0.40
codegen_flags: <defaults>
</compile_context>

<pallas_src>
import jax
import jax.numpy as jnp
from jax.experimental import pallas as pl
from jax.experimental.pallas import tpu as pltpu


def _round_up(n, m):
    return ((n + m - 1) // m) * m


def highway_kernel(x_ref, w_ref, b_ref, o_ref):
    """One batch tile of the 2-layer highway net (row-packed, lane-dense).

    x_ref : [TB, Dp]       bf16  (Dp = 128; each row packs Dp//D real rows)
    w_ref : [2, Dp, 2*Dp]  bf16  per-layer block-diag packed [Wn | Wg]
    b_ref : [2, 1, 2*Dp]   f32   per-layer lane-tiled packed [bn | bg]
    o_ref : [TB, Dp]       bf16
    """
    Dp = x_ref.shape[-1]
    x = x_ref[...].astype(jnp.float32)          # elementwise path stays f32

    def layer(x, w, b):
        # Single fused matmul covers both the normal and the gate path.
        # bf16 operands on the MXU, f32 accumulation; bias/activations in f32.
        y = jnp.dot(x.astype(w.dtype), w,
                    preferred_element_type=jnp.float32) + b
        h = jnp.maximum(y[:, :Dp], 0.0)         # ReLU(normal path), packed
        g = jax.nn.sigmoid(y[:, Dp:])           # sigmoid(gate path), packed
        # g*h + (1-g)*x  ==  x + g*(h - x)
        return x + g * (h - x)

    x = layer(x, w_ref[0], b_ref[0])
    x = layer(x, w_ref[1], b_ref[1])
    o_ref[...] = x.astype(o_ref.dtype)


def highway_net(x, params, *, w_dtype=jnp.bfloat16, max_batch_tile=512):
    """x: [B, D] float32; params: dict of transposed ([in, out]) weights/biases.

    Returns [B, D] float32 (kernel-internal activation I/O is bf16).
    """
    B, D = x.shape
    # Lane-dense packing: pack `reps` real rows per 128-wide vector row when
    # D divides 128; otherwise fall back to zero-padding D up to Dp.
    if 128 % D == 0:
        Dp, reps = 128, 128 // D
    else:
        Dp, reps = _round_up(D, 128), 1
    Dblk = Dp // reps                            # per-row block width (>= D)

    # ---- pack activations: [B, D] -> [Bq, Dp] (row-major reshape) ----------
    Br = _round_up(B, reps)
    x_pad = jnp.zeros((Br, Dblk), jnp.float32).at[:B, :D].set(x)
    xq = x_pad.reshape(Br // reps, Dp)
    Bq = xq.shape[0]

    # ---- batch tile: big, sublane-multiple, >=2 grid steps when worth it ---
    if Bq <= 16:
        TB = _round_up(max(Bq, 1), 16)           # one tiny tile
    else:
        TB = min(max_batch_tile, _round_up((Bq + 1) // 2, 16))  # >=2 steps (v7x)
    Bqp = _round_up(Bq, TB)
    xq = jnp.zeros((Bqp, Dp), jnp.float32).at[:Bq].set(xq).astype(w_dtype)

    # ---- pack weights/biases: block-diag [Wn | Wg], lane-tiled [bn | bg] ---
    eye = jnp.eye(reps, dtype=jnp.float32)

    def pad_block(w):                            # [D, D] -> [Dblk, Dblk]
        return jnp.zeros((Dblk, Dblk), jnp.float32).at[:D, :D].set(w)

    def pad_bias(b):                             # [1, D] -> [1, Dblk]
        return jnp.zeros((1, Dblk), jnp.float32).at[:, :D].set(b.reshape(1, -1))

    def pack_layer(wn, bn, wg, bg):
        w = jnp.concatenate([jnp.kron(eye, pad_block(wn)),
                             jnp.kron(eye, pad_block(wg))], axis=1)   # [Dp, 2Dp]
        b = jnp.concatenate([jnp.tile(pad_bias(bn), (1, reps)),
                             jnp.tile(pad_bias(bg), (1, reps))], axis=1)  # [1, 2Dp]
        return w.astype(w_dtype), b

    w0, b0 = pack_layer(params["wn0"], params["bn0"], params["wg0"], params["bg0"])
    w1, b1 = pack_layer(params["wn1"], params["bn1"], params["wg1"], params["bg1"])
    w_stacked = jnp.stack([w0, w1])              # [2, Dp, 2*Dp]  bf16, resident
    b_stacked = jnp.stack([b0, b1])              # [2, 1, 2*Dp]   f32,  resident

    x_spec = pl.BlockSpec((TB, Dp), lambda i: (i, 0))
    w_spec = pl.BlockSpec((2, Dp, 2 * Dp), lambda i: (0, 0, 0))   # constant index
    b_spec = pl.BlockSpec((2, 1, 2 * Dp), lambda i: (0, 0, 0))    # constant index

    out = pl.pallas_call(
        highway_kernel,
        out_shape=jax.ShapeDtypeStruct((Bqp, Dp), w_dtype),
        grid=(Bqp // TB,),
        in_specs=[x_spec, w_spec, b_spec],
        out_specs=x_spec,
        compiler_params=pltpu.CompilerParams(
            dimension_semantics=("parallel",),        # shard batch across TCs (v7x)
            vmem_limit_bytes=32 * 1024 * 1024),       # headroom on v5e's 16 MiB default
    )(xq, w_stacked, b_stacked)

    # Un-pack: drop padded packed-rows, un-pack rows, drop padded batch/features.
    out = out[:Bq].reshape(Br, Dblk)[:B, :D]
    return out.astype(jnp.float32)


def init_params(key, in_size):
    """Deterministic init. Weights stored transposed to [in, out] layout."""
    keys = jax.random.split(key, 8)
    scale = 1.0 / jnp.sqrt(in_size)

    def w(k):
        # PyTorch Linear weight is [out, in]; we store its transpose [in, out].
        return (jax.random.uniform(k, (in_size, in_size), jnp.float32,
                                   minval=-1.0, maxval=1.0) * scale)

    def b(k):
        return (jax.random.uniform(k, (1, in_size), jnp.float32,
                                   minval=-1.0, maxval=1.0) * scale)

    return {
        "wn0": w(keys[0]), "bn0": b(keys[1]),
        "wg0": w(keys[2]), "bg0": b(keys[3]),
        "wn1": w(keys[4]), "bn1": b(keys[5]),
        "wg1": w(keys[6]), "bg1": b(keys[7]),
    }


def highway_ref(x, p):
    """Pure-JAX f32 reference mirroring the PyTorch forward exactly."""
    def layer(x, wn, bn, wg, bg):
        h = jnp.maximum(x @ wn + bn, 0.0)
        g = jax.nn.sigmoid(x @ wg + bg)
        return g * h + (1.0 - g) * x
    x = layer(x, p["wn0"], p["bn0"], p["wg0"], p["bg0"])
    x = layer(x, p["wn1"], p["bn1"], p["wg1"], p["bg1"])
    return x


def highway_ref_matched(x, p, w_dtype):
    """Reference mirroring the kernel's numerics:
    bf16 activation I/O, bf16 matmul operands, f32 accumulation/elementwise."""
    x = x.astype(w_dtype).astype(jnp.float32)        # input quantization

    def layer(x, wn, bn, wg, bg):
        xm = x.astype(w_dtype)
        h = jnp.maximum(jnp.dot(xm, wn.astype(w_dtype),
                                preferred_element_type=jnp.float32) + bn, 0.0)
        g = jax.nn.sigmoid(jnp.dot(xm, wg.astype(w_dtype),
                                   preferred_element_type=jnp.float32) + bg)
        return x + g * (h - x)

    x = layer(x, p["wn0"], p["bn0"], p["wg0"], p["bg0"])
    x = layer(x, p["wn1"], p["bn1"], p["wg1"], p["bg1"])
    return x.astype(w_dtype).astype(jnp.float32)     # output quantization


if __name__ == "__main__":
    embed_size = 16
    in_size = embed_size * 2   # args.embed_size * 2 = 32
    batch = 8

    key = jax.random.PRNGKey(0)
    kx, kp = jax.random.split(key)
    x = jax.random.normal(kx, (batch, in_size), jnp.float32)
    params = init_params(kp, in_size)

    out = jax.block_until_ready(highway_net(x, params))
    assert out.shape == (batch, in_size)

    # Tight check vs a reference matching the kernel's bf16 numerics.
    ref_m = highway_ref_matched(x, params, jnp.bfloat16)
    assert jnp.allclose(out, ref_m, atol=2e-3, rtol=2e-3), "mismatch vs matched ref"

    # Looser check vs the full-f32 PyTorch-equivalent forward
    # (difference is only bf16 weight/activation quantization).
    ref = highway_ref(x, params)
    assert jnp.allclose(out, ref, atol=5e-2, rtol=5e-2), "mismatch vs f32 reference"

    print("KERNEL_OK")
</pallas_src>

<mosaic_0001>
module attributes {stable_mosaic.version = 11 : i64} {
  func.func @highway_kernel(%arg0: i32, %arg1: memref<16x128xbf16, #tpu.memory_space<vmem>>, %arg2: memref<2x128x256xbf16, #tpu.memory_space<vmem>>, %arg3: memref<2x1x256xf32, #tpu.memory_space<vmem>>, %arg4: memref<16x128xbf16, #tpu.memory_space<vmem>>) attributes {dimension_semantics = [#tpu.dimension_semantics<parallel>], iteration_bounds = array<i64: 1>, scalar_prefetch = 0 : i64, scratch_operands = 0 : i64, tpu.core_type = #tpu.core_type<tc>, window_params = [{transform_indices = @transform_0, window_bounds = array<i64: 16, 128>}, {pipeline_mode = #tpu.pipeline_mode<synchronous>, transform_indices = @transform_1, window_bounds = array<i64: 2, 128, 256>}, {pipeline_mode = #tpu.pipeline_mode<synchronous>, transform_indices = @transform_2, window_bounds = array<i64: 2, 1, 256>}, {transform_indices = @transform_3, window_bounds = array<i64: 16, 128>}]} {
    %c0 = arith.constant 0 : index
    %c0_0 = arith.constant 0 : index
    %0 = vector.load %arg1[%c0, %c0_0] : memref<16x128xbf16, #tpu.memory_space<vmem>>, vector<16x128xbf16>
    %1 = arith.extf %0 : vector<16x128xbf16> to vector<16x128xf32>
    %c0_1 = arith.constant 0 : index
    %c0_2 = arith.constant 0 : index
    %c0_3 = arith.constant 0 : index
    %2 = vector.load %arg2[%c0_1, %c0_2, %c0_3] : memref<2x128x256xbf16, #tpu.memory_space<vmem>>, vector<1x128x256xbf16>
    %3 = vector.shape_cast %2 : vector<1x128x256xbf16> to vector<128x256xbf16>
    %c0_4 = arith.constant 0 : index
    %c0_5 = arith.constant 0 : index
    %c0_6 = arith.constant 0 : index
    %4 = vector.load %arg3[%c0_4, %c0_5, %c0_6] : memref<2x1x256xf32, #tpu.memory_space<vmem>>, vector<1x1x256xf32>
    %5 = vector.shape_cast %4 : vector<1x1x256xf32> to vector<1x256xf32>
    %6 = arith.truncf %1 : vector<16x128xf32> to vector<16x128xbf16>
    %cst = arith.constant dense<0.000000e+00> : vector<16x256xf32>
    %7 = tpu.matmul %6, %3, %cst {dimension_numbers = #tpu.dot_dimension_numbers<[1], [0], [0], [1], [0, 0, 1, 1], [], []>} : vector<16x128xbf16>, vector<128x256xbf16>, vector<16x256xf32> -> vector<16x256xf32>
    %8 = vector.broadcast %5 : vector<1x256xf32> to vector<16x256xf32>
    %9 = arith.addf %7, %8 : vector<16x256xf32>
    %10 = vector.extract_strided_slice %9 {offsets = [0, 0], sizes = [16, 128], strides = [1, 1]} : vector<16x256xf32> to vector<16x128xf32>
    %cst_7 = arith.constant 0.000000e+00 : f32
    %11 = vector.broadcast %cst_7 : f32 to vector<16x128xf32>
    %12 = arith.maximumf %10, %11 : vector<16x128xf32>
    %13 = vector.extract_strided_slice %9 {offsets = [0, 128], sizes = [16, 128], strides = [1, 1]} : vector<16x256xf32> to vector<16x128xf32>
    %14 = arith.negf %13 : vector<16x128xf32>
    %15 = math.exp %14 : vector<16x128xf32>
    %cst_8 = arith.constant 1.000000e+00 : f32
    %16 = vector.broadcast %cst_8 : f32 to vector<16x128xf32>
    %17 = arith.addf %16, %15 : vector<16x128xf32>
    %18 = arith.divf %16, %17 : vector<16x128xf32>
    %19 = arith.subf %12, %1 : vector<16x128xf32>
    %20 = arith.mulf %18, %19 : vector<16x128xf32>
    %21 = arith.addf %1, %20 : vector<16x128xf32>
    %c1 = arith.constant 1 : index
    %c0_9 = arith.constant 0 : index
    %c0_10 = arith.constant 0 : index
    %22 = vector.load %arg2[%c1, %c0_9, %c0_10] : memref<2x128x256xbf16, #tpu.memory_space<vmem>>, vector<1x128x256xbf16>
    %23 = vector.shape_cast %22 : vector<1x128x256xbf16> to vector<128x256xbf16>
    %c1_11 = arith.constant 1 : index
    %c0_12 = arith.constant 0 : index
    %c0_13 = arith.constant 0 : index
    %24 = vector.load %arg3[%c1_11, %c0_12, %c0_13] : memref<2x1x256xf32, #tpu.memory_space<vmem>>, vector<1x1x256xf32>
    %25 = vector.shape_cast %24 : vector<1x1x256xf32> to vector<1x256xf32>
    %26 = arith.truncf %21 : vector<16x128xf32> to vector<16x128xbf16>
    %cst_14 = arith.constant dense<0.000000e+00> : vector<16x256xf32>
    %27 = tpu.matmul %26, %23, %cst_14 {dimension_numbers = #tpu.dot_dimension_numbers<[1], [0], [0], [1], [0, 0, 1, 1], [], []>} : vector<16x128xbf16>, vector<128x256xbf16>, vector<16x256xf32> -> vector<16x256xf32>
    %28 = vector.broadcast %25 : vector<1x256xf32> to vector<16x256xf32>
    %29 = arith.addf %27, %28 : vector<16x256xf32>
    %30 = vector.extract_strided_slice %29 {offsets = [0, 0], sizes = [16, 128], strides = [1, 1]} : vector<16x256xf32> to vector<16x128xf32>
    %cst_15 = arith.constant 0.000000e+00 : f32
    %31 = vector.broadcast %cst_15 : f32 to vector<16x128xf32>
    %32 = arith.maximumf %30, %31 : vector<16x128xf32>
    %33 = vector.extract_strided_slice %29 {offsets = [0, 128], sizes = [16, 128], strides = [1, 1]} : vector<16x256xf32> to vector<16x128xf32>
    %34 = arith.negf %33 : vector<16x128xf32>
    %35 = math.exp %34 : vector<16x128xf32>
    %cst_16 = arith.constant 1.000000e+00 : f32
    %36 = vector.broadcast %cst_16 : f32 to vector<16x128xf32>
    %37 = arith.addf %36, %35 : vector<16x128xf32>
    %38 = arith.divf %36, %37 : vector<16x128xf32>
    %39 = arith.subf %32, %21 : vector<16x128xf32>
    %40 = arith.mulf %38, %39 : vector<16x128xf32>
    %41 = arith.addf %21, %40 : vector<16x128xf32>
    %42 = arith.truncf %41 : vector<16x128xf32> to vector<16x128xbf16>
    %c0_17 = arith.constant 0 : index
    %c0_18 = arith.constant 0 : index
    %43 = vector.load %arg4[%c0_17, %c0_18] : memref<16x128xbf16, #tpu.memory_space<vmem>>, vector<16x128xbf16>
    tpu.vector_store %arg4[%c0_17, %c0_18], %42 {strides = array<i32>} : memref<16x128xbf16, #tpu.memory_space<vmem>>, vector<16x128xbf16>,
    return
  }
  func.func @transform_0(%arg0: i32) -> (i32, i32) {
    %c0_i32 = arith.constant 0 : i32
    %c0_i32_0 = arith.constant 0 : i32
    return %arg0, %c0_i32 : i32, i32
  }
  func.func @transform_1(%arg0: i32) -> (i32, i32, i32) {
    %c0_i32 = arith.constant 0 : i32
    %c0_i32_0 = arith.constant 0 : i32
    %c0_i32_1 = arith.constant 0 : i32
    %c0_i32_2 = arith.constant 0 : i32
    return %c0_i32, %c0_i32_0, %c0_i32_1 : i32, i32, i32
  }
  func.func @transform_2(%arg0: i32) -> (i32, i32, i32) {
    %c0_i32 = arith.constant 0 : i32
    %c0_i32_0 = arith.constant 0 : i32
    %c0_i32_1 = arith.constant 0 : i32
    %c0_i32_2 = arith.constant 0 : i32
    return %c0_i32, %c0_i32_0, %c0_i32_1 : i32, i32, i32
  }
  func.func @transform_3(%arg0: i32) -> (i32, i32) {
    %c0_i32 = arith.constant 0 : i32
    %c0_i32_0 = arith.constant 0 : i32
    return %arg0, %c0_i32 : i32, i32
  }
}

</mosaic_0001>

<llo_original>
// kernel: tpu_custom_call.1
$region0: #{tpu_custom_call.1}
  #allocation0 [shape = 'u32[]', space=smem, size = 0x4, offset = 0x4, fixed_abs, tag = 'smem constant byte address 0x4 - core index']
  #allocation1 [shape = 'u32[144,128]{1,0:T(1,128)}', space=vmem, size = 0x12000, scoped, tag = 'internal scratch']
  %s0 = inlined_call_operand.hbm [shape: bf16[16,128], index: 0, kind: input, shape index: {}]
  %s1 = inlined_call_operand.hbm [shape: bf16[2,128,256], index: 1, kind: input, shape index: {}]
  %s2 = inlined_call_operand.vmem [shape: f32[2,1,256], index: 2, kind: input, shape index: {}]
  %s3 = inlined_call_operand.hbm [shape: bf16[16,128], index: 3, kind: output, shape index: {}]
  %s4 = sld [smem:[#allocation0]]
  $region30: #{tpu_custom_call.1} parent=0
    _
  %s6 = ssub.s32 1, %s4
  %s7 = scalar_select 0, %s6, %s4
  $region1: #{tpu_custom_call.1} parent=0
    #allocation2 [shape = 'u8[4096]{0}', space=vmem, size = 0x1000, scoped, tag = 'input window, operand 0, single buffered']
    #allocation3 [shape = 's32[1]{0}', space=sflag, size = 0x4, scoped, tag = 'scoped memory for tpu_custom_call.1']
    #allocation4 [shape = 's32[1]{0}', space=sflag, size = 0x4, scoped, tag = 'scoped memory for tpu_custom_call.1']
    #allocation5 [shape = 'u8[131072]{0}', space=vmem, size = 0x20000, scoped, tag = 'input window, operand 1, single buffered']
    #allocation6 [shape = 's32[1]{0}', space=sflag, size = 0x4, scoped, tag = 'scoped memory for tpu_custom_call.1']
    #allocation7 [shape = 'u8[4096]{0}', space=vmem, size = 0x1000, scoped, tag = 'output window, operand 0, single buffered']
    %8 = vsyncpa [#allocation3], 0
    %9 = vsyncpa [#allocation6], 0
    %10 = vsyncpa [#allocation4], 0
    // Predicated region
    $region2: #{tpu_custom_call.1} parent=1 // pred_check
      _
    $region3: #{tpu_custom_call.1} parent=1 // pred_check_branch
      %12 = sbr.rel (0) target = $region5
    $region4: #{tpu_custom_call.1} parent=1 // pred_region
      %s14 = ssub.s32 128, 128
      %15 = vsyncadd [#allocation3], %s14
      %s16 = sshll.u32 [#allocation2], 4
      %s17 = int_to_ptr.vmem [resolvable:$true] %s16
      %22 = dma.hbm_to_vmem [thread:$0]  %s0, 128, %s17, [#allocation3], 64, 64, 4
    $region5: #{tpu_custom_call.1} parent=1 // pred_fallthru
      _
    // Predicated region
    $region6: #{tpu_custom_call.1} parent=1 // pred_check
      _
    $region7: #{tpu_custom_call.1} parent=1 // pred_check_branch
      %24 = sbr.rel (0) target = $region9
    $region8: #{tpu_custom_call.1} parent=1 // pred_region
      %s26 = ssub.s32 4096, 4096
      %27 = vsyncadd [#allocation6], %s26
      %s28 = sshll.u32 [#allocation5], 4
      %s29 = int_to_ptr.vmem [resolvable:$true] %s28
      %34 = dma.hbm_to_vmem [thread:$0]  %s1, 4096, %s29, [#allocation6], 128, 128, 8
    $region9: #{tpu_custom_call.1} parent=1 // pred_fallthru
      _
    // Predicated region
    $region10: #{tpu_custom_call.1} parent=1 // pred_check
      _
    $region11: #{tpu_custom_call.1} parent=1 // pred_check_branch
      %36 = sbr.rel (0) target = $region13
    $region12: #{tpu_custom_call.1} parent=1 // pred_region
      _
    $region13: #{tpu_custom_call.1} parent=1 // pred_fallthru
      _
    // Predicated region
    $region14: #{tpu_custom_call.1} parent=1 // pred_check
      _
    $region15: #{tpu_custom_call.1} parent=1 // pred_check_branch
      %38 = sbr.rel (0) target = $region17
    $region16: #{tpu_custom_call.1} parent=1 // pred_region
      %39 = dma.done [#allocation3], 128
    $region17: #{tpu_custom_call.1} parent=1 // pred_fallthru
      _
    // Predicated region
    $region18: #{tpu_custom_call.1} parent=1 // pred_check
      _
    $region19: #{tpu_custom_call.1} parent=1 // pred_check_branch
      %41 = sbr.rel (0) target = $region21
    $region20: #{tpu_custom_call.1} parent=1 // pred_region
      %42 = dma.done [#allocation6], 4096
    $region21: #{tpu_custom_call.1} parent=1 // pred_fallthru
      _
    %v44 = vld [vmem:[#allocation2] sm:$0xf]
    %v45 = vld [vmem:[#allocation2 + $0x4] sm:$0xf]
    %v46 = vunpack.c.l.bf16 %v44
    %v47 = vunpack.c.l.bf16 %v45
    %v48 = vld [vmem:[#allocation5] sm:$0xff]
    %v49 = vld [vmem:[#allocation5 + $0x8] sm:$0xff]
    %v50 = vld [vmem:[#allocation5 + $0x10] sm:$0xff]
    %v51 = vld [vmem:[#allocation5 + $0x18] sm:$0xff]
    %v52 = vld [vmem:[#allocation5 + $0x20] sm:$0xff]
    %v53 = vld [vmem:[#allocation5 + $0x28] sm:$0xff]
    %v54 = vld [vmem:[#allocation5 + $0x30] sm:$0xff]
    %v55 = vld [vmem:[#allocation5 + $0x38] sm:$0xff]
    %v56 = vld [vmem:[#allocation5 + $0x40] sm:$0xff]
    %v57 = vld [vmem:[#allocation5 + $0x48] sm:$0xff]
    %v58 = vld [vmem:[#allocation5 + $0x50] sm:$0xff]
    %v59 = vld [vmem:[#allocation5 + $0x58] sm:$0xff]
    %v60 = vld [vmem:[#allocation5 + $0x60] sm:$0xff]
    %v61 = vld [vmem:[#allocation5 + $0x68] sm:$0xff]
    %v62 = vld [vmem:[#allocation5 + $0x70] sm:$0xff]
    %v63 = vld [vmem:[#allocation5 + $0x78] sm:$0xff]
    %v64 = vld [vmem:[%s2] sm:$0x3]
    %v66 = vlaneseq
    %v67 = vshrl.u32 %v66, 7
    %v68 = vsub.s32 0, %v67
    %v69 = vrot.slane %v64, %v68
    %v70 = vlaneseq
    %v71 = vshrl.u32 %v70, 7
    %v72 = vsub.s32 1, %v71
    %v73 = vrot.slane %v64, %v72
    %v78 = vunpack.c.l.b16 %v44
    %v79 = vunpack.c.l.b16 %v45
    %v80 = vpack.c.b16 %v79, %v78
    %v98 = vunpack.c.l.b16 %v48
    %v99 = vunpack.c.h.b16 %v48
    %v100 = vunpack.c.l.b16 %v49
    %v101 = vunpack.c.h.b16 %v49
    %v102 = vunpack.c.l.b16 %v50
    %v103 = vunpack.c.h.b16 %v50
    %v104 = vunpack.c.l.b16 %v51
    %v105 = vunpack.c.h.b16 %v51
    %v106 = vunpack.c.l.b16 %v52
    %v107 = vunpack.c.h.b16 %v52
    %v108 = vunpack.c.l.b16 %v53
    %v109 = vunpack.c.h.b16 %v53
    %v110 = vunpack.c.l.b16 %v54
    %v111 = vunpack.c.h.b16 %v54
    %v112 = vunpack.c.l.b16 %v55
    %v113 = vunpack.c.h.b16 %v55
    %v114 = vunpack.c.l.b16 %v56
    %v115 = vunpack.c.h.b16 %v56
    %v116 = vunpack.c.l.b16 %v57
    %v117 = vunpack.c.h.b16 %v57
    %v118 = vunpack.c.l.b16 %v58
    %v119 = vunpack.c.h.b16 %v58
    %v120 = vunpack.c.l.b16 %v59
    %v121 = vunpack.c.h.b16 %v59
    %v122 = vunpack.c.l.b16 %v60
    %v123 = vunpack.c.h.b16 %v60
    %v124 = vunpack.c.l.b16 %v61
    %v125 = vunpack.c.h.b16 %v61
    %v126 = vunpack.c.l.b16 %v62
    %v127 = vunpack.c.h.b16 %v62
    %v128 = vunpack.c.l.b16 %v63
    %v129 = vunpack.c.h.b16 %v63
    %v130 = vpack.c.b16 %v100, %v98
    %v131 = vpack.c.b16 %v101, %v99
    %v132 = vpack.c.b16 %v104, %v102
    %v133 = vpack.c.b16 %v105, %v103
    %v134 = vpack.c.b16 %v108, %v106
    %v135 = vpack.c.b16 %v109, %v107
    %v136 = vpack.c.b16 %v112, %v110
    %v137 = vpack.c.b16 %v113, %v111
    %v138 = vpack.c.b16 %v116, %v114
    %v139 = vpack.c.b16 %v117, %v115
    %v140 = vpack.c.b16 %v120, %v118
    %v141 = vpack.c.b16 %v121, %v119
    %v142 = vpack.c.b16 %v124, %v122
    %v143 = vpack.c.b16 %v125, %v123
    %v144 = vpack.c.b16 %v128, %v126
    %v145 = vpack.c.b16 %v129, %v127
    %162 = vmatprep.subr.bf16.mxu0 %v131
    %163 = vmatpush1.bf16.msra.mxu0 %v130
    %164 = vmatprep.subr.bf16.mxu0 %v133
    %165 = vmatpush1.bf16.msra.mxu0 %v132
    %166 = vmatprep.subr.bf16.mxu0 %v135
    %167 = vmatpush1.bf16.msra.mxu0 %v134
    %168 = vmatprep.subr.bf16.mxu0 %v137
    %169 = vmatpush1.bf16.msra.mxu0 %v136
    %170 = vmatprep.subr.bf16.mxu0 %v139
    %171 = vmatpush1.bf16.msra.mxu0 %v138
    %172 = vmatprep.subr.bf16.mxu0 %v141
    %173 = vmatpush1.bf16.msra.mxu0 %v140
    %174 = vmatprep.subr.bf16.mxu0 %v143
    %175 = vmatpush1.bf16.msra.mxu0 %v142
    %176 = vmatprep.subr.bf16.mxu0 %v145
    %177 = vmatpush1.bf16.msra.mxu0 %v144
    %178 = vmatprep.subr.bf16.mxu0 0
    %179 = vmatpush1.bf16.msra.mxu0 0
    %180 = vmatprep.subr.bf16.mxu0 0
    %181 = vmatpush1.bf16.msra.mxu0 0
    %182 = vmatprep.subr.bf16.mxu0 0
    %183 = vmatpush1.bf16.msra.mxu0 0
    %184 = vmatprep.subr.bf16.mxu0 0
    %185 = vmatpush1.bf16.msra.mxu0 0
    %186 = vmatprep.subr.bf16.mxu0 0
    %187 = vmatpush1.bf16.msra.mxu0 0
    %188 = vmatprep.subr.bf16.mxu0 0
    %189 = vmatpush1.bf16.msra.mxu0 0
    %190 = vmatprep.subr.bf16.mxu0 0
    %191 = vmatpush1.bf16.msra.mxu0 0
    %192 = vmatprep.subr.bf16.mxu0 0
    %193 = vmatpush1.bf16.msra.mxu0 0
    %194 = vmatprep.mubr.bf16.mxu0 0
    %195 = vmatmul.mubr.bf16.gmra.mrb[0].mxu0 %v80
    %v196 = vpop.f32.mrb[0].mxu0
    %v197 = vadd.f32 %v69, %v196
    %v198 = vpop.f32.mrb[0].mxu0
    %v199 = vadd.f32 %v73, %v198
    %v200 = vpop.f32.mrb[0].mxu0
    %v201 = vadd.f32 %v69, %v200
    %v202 = vpop.f32.mrb[0].mxu0
    %v203 = vadd.f32 %v73, %v202
    %204 = vdwg.mxu0
    %v205 = vmax.f32 %v197, 0.0
    %v206 = vmax.f32 %v201, 0.0
    %v207 = vxor.u32 %v199, 2147483648
    %v208 = vxor.u32 %v203, 2147483648
    %v209 = vmul.f32 %v207, 1.442695
    %v210 = vpow.pop %v209
    %v211 = vmul.f32 %v208, 1.442695
    %v212 = vpow.pop %v211
    %v213 = vadd.f32 %v210, 1.0
    %v214 = vadd.f32 %v212, 1.0
    %v215 = vrcp.pop %v213
    %v216 = vmul.f32 1.0, %v215
    %v217 = vrcp.pop %v214
    %v218 = vmul.f32 1.0, %v217
    %v219 = vsub.f32 %v205, %v46
    %v220 = vsub.f32 %v206, %v47
    %v221 = vmul.f32 %v216, %v219
    %v222 = vmul.f32 %v218, %v220
    %v223 = vadd.f32 %v46, %v221
    %v224 = vadd.f32 %v47, %v222
    %s225 = scalar_lea.vmem [#allocation5], 128
    %v226 = vld [vmem:[%s225] sm:$0xff]
    %v227 = vld [vmem:[%s225 + $0x8] sm:$0xff]
    %v228 = vld [vmem:[%s225 + $0x10] sm:$0xff]
    %v229 = vld [vmem:[%s225 + $0x18] sm:$0xff]
    %v230 = vld [vmem:[%s225 + $0x20] sm:$0xff]
    %v231 = vld [vmem:[%s225 + $0x28] sm:$0xff]
    %v232 = vld [vmem:[%s225 + $0x30] sm:$0xff]
    %v233 = vld [vmem:[%s225 + $0x38] sm:$0xff]
    %v234 = vld [vmem:[%s225 + $0x40] sm:$0xff]
    %v235 = vld [vmem:[%s225 + $0x48] sm:$0xff]
    %v236 = vld [vmem:[%s225 + $0x50] sm:$0xff]
    %v237 = vld [vmem:[%s225 + $0x58] sm:$0xff]
    %v238 = vld [vmem:[%s225 + $0x60] sm:$0xff]
    %v239 = vld [vmem:[%s225 + $0x68] sm:$0xff]
    %v240 = vld [vmem:[%s225 + $0x70] sm:$0xff]
    %v241 = vld [vmem:[%s225 + $0x78] sm:$0xff]
    %s242 = scalar_lea.vmem %s2, 2
    %v243 = vld [vmem:[%s242] sm:$0x3]
    %v244 = vpack.c.bf16 %v224, %v223
    %v246 = vlaneseq
    %v247 = vshrl.u32 %v246, 7
    %v248 = vsub.s32 0, %v247
    %v249 = vrot.slane %v243, %v248
    %v250 = vlaneseq
    %v251 = vshrl.u32 %v250, 7
    %v252 = vsub.s32 1, %v251
    %v253 = vrot.slane %v243, %v252
    %v272 = vunpack.c.l.b16 %v226
    %v273 = vunpack.c.h.b16 %v226
    %v274 = vunpack.c.l.b16 %v227
    %v275 = vunpack.c.h.b16 %v227
    %v276 = vunpack.c.l.b16 %v228
    %v277 = vunpack.c.h.b16 %v228
    %v278 = vunpack.c.l.b16 %v229
    %v279 = vunpack.c.h.b16 %v229
    %v280 = vunpack.c.l.b16 %v230
    %v281 = vunpack.c.h.b16 %v230
    %v282 = vunpack.c.l.b16 %v231
    %v283 = vunpack.c.h.b16 %v231
    %v284 = vunpack.c.l.b16 %v232
    %v285 = vunpack.c.h.b16 %v232
    %v286 = vunpack.c.l.b16 %v233
    %v287 = vunpack.c.h.b16 %v233
    %v288 = vunpack.c.l.b16 %v234
    %v289 = vunpack.c.h.b16 %v234
    %v290 = vunpack.c.l.b16 %v235
    %v291 = vunpack.c.h.b16 %v235
    %v292 = vunpack.c.l.b16 %v236
    %v293 = vunpack.c.h.b16 %v236
    %v294 = vunpack.c.l.b16 %v237
    %v295 = vunpack.c.h.b16 %v237
    %v296 = vunpack.c.l.b16 %v238
    %v297 = vunpack.c.h.b16 %v238
    %v298 = vunpack.c.l.b16 %v239
    %v299 = vunpack.c.h.b16 %v239
    %v300 = vunpack.c.l.b16 %v240
    %v301 = vunpack.c.h.b16 %v240
    %v302 = vunpack.c.l.b16 %v241
    %v303 = vunpack.c.h.b16 %v241
    %v304 = vpack.c.b16 %v274, %v272
    %v305 = vpack.c.b16 %v275, %v273
    %v306 = vpack.c.b16 %v278, %v276
    %v307 = vpack.c.b16 %v279, %v277
    %v308 = vpack.c.b16 %v282, %v280
    %v309 = vpack.c.b16 %v283, %v281
    %v310 = vpack.c.b16 %v286, %v284
    %v311 = vpack.c.b16 %v287, %v285
    %v312 = vpack.c.b16 %v290, %v288
    %v313 = vpack.c.b16 %v291, %v289
    %v314 = vpack.c.b16 %v294, %v292
    %v315 = vpack.c.b16 %v295, %v293
    %v316 = vpack.c.b16 %v298, %v296
    %v317 = vpack.c.b16 %v299, %v297
    %v318 = vpack.c.b16 %v302, %v300
    %v319 = vpack.c.b16 %v303, %v301
    %336 = vmatprep.subr.bf16.mxu0 %v305
    %337 = vmatpush1.bf16.msra.mxu0 %v304
    %338 = vmatprep.subr.bf16.mxu0 %v307
    %339 = vmatpush1.bf16.msra.mxu0 %v306
    %340 = vmatprep.subr.bf16.mxu0 %v309
    %341 = vmatpush1.bf16.msra.mxu0 %v308
    %342 = vmatprep.subr.bf16.mxu0 %v311
    %343 = vmatpush1.bf16.msra.mxu0 %v310
    %344 = vmatprep.subr.bf16.mxu0 %v313
    %345 = vmatpush1.bf16.msra.mxu0 %v312
    %346 = vmatprep.subr.bf16.mxu0 %v315
    %347 = vmatpush1.bf16.msra.mxu0 %v314
    %348 = vmatprep.subr.bf16.mxu0 %v317
    %349 = vmatpush1.bf16.msra.mxu0 %v316
    %350 = vmatprep.subr.bf16.mxu0 %v319
    %351 = vmatpush1.bf16.msra.mxu0 %v318
    %352 = vmatprep.subr.bf16.mxu0 0
    %353 = vmatpush1.bf16.msra.mxu0 0
    %354 = vmatprep.subr.bf16.mxu0 0
    %355 = vmatpush1.bf16.msra.mxu0 0
    %356 = vmatprep.subr.bf16.mxu0 0
    %357 = vmatpush1.bf16.msra.mxu0 0
    %358 = vmatprep.subr.bf16.mxu0 0
    %359 = vmatpush1.bf16.msra.mxu0 0
    %360 = vmatprep.subr.bf16.mxu0 0
    %361 = vmatpush1.bf16.msra.mxu0 0
    %362 = vmatprep.subr.bf16.mxu0 0
    %363 = vmatpush1.bf16.msra.mxu0 0
    %364 = vmatprep.subr.bf16.mxu0 0
    %365 = vmatpush1.bf16.msra.mxu0 0
    %366 = vmatprep.subr.bf16.mxu0 0
    %367 = vmatpush1.bf16.msra.mxu0 0
    %368 = vmatprep.mubr.bf16.mxu0 0
    %369 = vmatmul.mubr.bf16.gmra.mrb[0].mxu0 %v244
    %v370 = vpop.f32.mrb[0].mxu0
    %v371 = vadd.f32 %v249, %v370
    %v372 = vpop.f32.mrb[0].mxu0
    %v373 = vadd.f32 %v253, %v372
    %v374 = vpop.f32.mrb[0].mxu0
    %v375 = vadd.f32 %v249, %v374
    %v376 = vpop.f32.mrb[0].mxu0
    %v377 = vadd.f32 %v253, %v376
    %378 = vdwg.mxu0
    %v379 = vmax.f32 %v371, 0.0
    %v380 = vmax.f32 %v375, 0.0
    %v381 = vxor.u32 %v373, 2147483648
    %v382 = vxor.u32 %v377, 2147483648
    %v383 = vmul.f32 %v381, 1.442695
    %v384 = vpow.pop %v383
    %v385 = vmul.f32 %v382, 1.442695
    %v386 = vpow.pop %v385
    %v387 = vadd.f32 %v384, 1.0
    %v388 = vadd.f32 %v386, 1.0
    %v389 = vrcp.pop %v387
    %v390 = vmul.f32 1.0, %v389
    %v391 = vrcp.pop %v388
    %v392 = vmul.f32 1.0, %v391
    %v393 = vsub.f32 %v379, %v223
    %v394 = vsub.f32 %v380, %v224
    %v395 = vmul.f32 %v390, %v393
    %v396 = vmul.f32 %v392, %v394
    %v397 = vadd.f32 %v223, %v395
    %v398 = vadd.f32 %v224, %v396
    %v399 = vpack.c.bf16 %v398, %v397
    %v401 = vunpack.c.l.b16 %v399
    %v402 = vunpack.c.h.b16 %v399
    %v403 = vpack.c.b16 %v401, %v401
    %v404 = vpack.c.b16 %v402, %v402
    %407 = vst [vmem:[#allocation7] sm:$0xf] %v403
    %408 = vst [vmem:[#allocation7 + $0x4] sm:$0xf] %v404
    // Predicated region
    $region22: #{tpu_custom_call.1} parent=1 // pred_check
      _
    $region23: #{tpu_custom_call.1} parent=1 // pred_check_branch
      %410 = sbr.rel (0) target = $region25
    $region24: #{tpu_custom_call.1} parent=1 // pred_region
      %s412 = ssub.s32 128, 128
      %413 = vsyncadd [#allocation4], %s412
      %s414 = sshll.u32 [#allocation7], 4
      %s415 = int_to_ptr.vmem [resolvable:$true] %s414
      %420 = dma.vmem_to_hbm [thread:$0]  %s415, 128, %s3, [#allocation4], 64, 64, 4
    $region25: #{tpu_custom_call.1} parent=1 // pred_fallthru
      _
    // Predicated region
    $region26: #{tpu_custom_call.1} parent=1 // pred_check
      _
    $region27: #{tpu_custom_call.1} parent=1 // pred_check_branch
      %422 = sbr.rel (0) target = $region29
    $region28: #{tpu_custom_call.1} parent=1 // pred_region
      %423 = dma.done [#allocation4], 128
    $region29: #{tpu_custom_call.1} parent=1 // pred_fallthru
      _
    %424 = vsyncpa [#allocation3], 1
    %425 = vsyncpa [#allocation6], 1
    %426 = vsyncpa [#allocation4], 1

</llo_original>
